<compile_context>
chip_gen: v7x
topology: tpu7x:2x2x1
jax: 0.10.0
libtpu: 0.0.40
codegen_flags: <defaults>
</compile_context>

<pallas_src>
import functools

import jax
import jax.numpy as jnp
from jax.experimental import pallas as pl
from jax.experimental.pallas import tpu as pltpu


def _round_up(x, m):
    return -(-x // m) * m


def _pad_to(x, shape):
    pads = [(0, t - s) for s, t in zip(x.shape, shape)]
    return jnp.pad(x, pads)


def phase_gnn_kernel(node_ref, adj_ref, invn_ref,
                     w_init_ref, b_init_ref,
                     w_conv_ref, b_conv_ref,
                     w_p2h_ref, b_p2h_ref,
                     w_hid_ref, b_hid_ref,
                     w_out_ref, b_out_ref,
                     out_ref,
                     *, n_conv, n_hidden, graphs, atoms):
    f32 = jnp.float32
    bf16 = jnp.bfloat16
    Fp = w_init_ref.shape[1]

    adj = adj_ref[0]        # (M, M) bf16, binary block-diagonal (exact)
    inv_n = invn_ref[0]     # (M, 1) f32, exact precomputed 1/degree

    # --- init transform: Linear(node_vec_len -> node_fea_len), M rows at once ---
    x = node_ref[0]                                               # (M, Vp) bf16
    fea = jnp.dot(x, w_init_ref[...],
                  preferred_element_type=f32) + b_init_ref[...]   # (M, Fp) f32

    # --- graph convolution layers (flat (M, Fp) throughout) ---
    # TODO(synk): switch to lax.fori_loop(unroll=True) with a VMEM-carried fea
    # if n_conv grows beyond a few layers (bounds vreg live ranges).
    for i in range(n_conv):
        h = jnp.dot(fea.astype(bf16), w_conv_ref[i],
                    preferred_element_type=f32) + b_conv_ref[i]   # (M, Fp)
        # block-diag message passing + exact f32 degree normalization
        h = jnp.dot(adj, h.astype(bf16), preferred_element_type=f32) * inv_n
        fea = jnp.maximum(h, 0.0)                                 # ReLU

    # --- pooling: sum over atoms (1/A folded into w_p2h) + ReLU ---
    pooled = jnp.maximum(
        jnp.sum(fea.reshape(graphs, atoms, Fp), axis=1), 0.0)     # (G, Fp)

    # --- MLP head (dropout with p_dropout=0.0 is the identity) ---
    # TODO(synk): for large n_steps, emit `pooled` per step instead and batch
    # the head over all B graphs in one matmul per layer (M=G here is tiny).
    hidden = jnp.maximum(
        jnp.dot(pooled.astype(bf16), w_p2h_ref[...],
                preferred_element_type=f32) + b_p2h_ref[...], 0.0)
    for _ in range(n_hidden - 1):   # shared hidden_layer weights, as in PyTorch
        hidden = jnp.maximum(
            jnp.dot(hidden.astype(bf16), w_hid_ref[...],
                    preferred_element_type=f32) + b_hid_ref[...], 0.0)

    out = jnp.dot(hidden.astype(bf16), w_out_ref[...],
                  preferred_element_type=f32) + b_out_ref[...]
    out_ref[0] = out.astype(out_ref.dtype)                        # lane-dense store


def phase_gnn_forward(node_mat, adj_mat, params, *, n_conv, n_hidden,
                      graphs_per_step=None, lane=128):
    B, A, V = node_mat.shape
    F = params["w_init"].shape[1]
    H = params["w_p2h"].shape[1]
    O = params["w_out"].shape[1]

    # Zero-pad feature dims to 128 lanes (results unchanged; pad sliced off).
    Vp, Fp, Hp, Op = (_round_up(d, lane) for d in (V, F, H, O))

    # --- choose graphs per grid step ---
    TARGET_ROWS = 256          # fills v6e/v7x 256-wide MXU; 2 tiles on v5e
    if graphs_per_step is None:
        graphs_per_step = max(1, TARGET_ROWS // A)
    G = min(graphs_per_step, B)
    # Keep >=2 parallel grid steps (v7x second TensorCore) when each step
    # would still have >=128 MXU rows.
    if -(-B // G) < 2:
        half = -(-B // 2)
        if half * A >= 128:
            G = half
    Bp = _round_up(B, G)
    n_steps = Bp // G
    M = G * A

    # --- node features: (n_steps, M, Vp) bf16 ---
    node_p = _pad_to(node_mat, (B, A, Vp)).astype(jnp.bfloat16)
    if Bp > B:
        node_p = _pad_to(node_p, (Bp, A, Vp))
    node_p = node_p.reshape(n_steps, M, Vp)

    # --- adjacency prep (all in the wrapper; nothing left in-kernel) ---
    adj_p = adj_mat.astype(jnp.float32)
    if Bp > B:
        # Identity adjacency for dummy graphs keeps degrees nonzero (no NaN).
        pad_adj = jnp.broadcast_to(jnp.eye(A, dtype=jnp.float32), (Bp - B, A, A))
        adj_p = jnp.concatenate([adj_p, pad_adj], axis=0)
    # Exact f32 inverse degree (same zero-degree hazard as the reference:
    # a row with no neighbors and no self-loop yields inf/NaN).
    n_neigh = jnp.sum(adj_p, axis=-1, keepdims=True)              # (Bp, A, 1)
    inv_n = (1.0 / n_neigh).reshape(n_steps, M, 1).astype(jnp.float32)
    # Block-diagonal binary adjacency per step: (n_steps, M, M) bf16 (exact).
    adj4 = adj_p.reshape(n_steps, G, A, A)
    eye_g = jnp.eye(G, dtype=jnp.float32)
    adj_bd = jnp.einsum("sgij,gh->sgihj", adj4, eye_g)
    adj_bd = adj_bd.reshape(n_steps, M, M).astype(jnp.bfloat16)

    # --- weights: cast to bf16 once (MXU-native); biases stay f32 ---
    w_init = _pad_to(params["w_init"], (Vp, Fp)).astype(jnp.bfloat16)
    b_init = _pad_to(params["b_init"], (1, Fp)).astype(jnp.float32)
    w_conv = _pad_to(params["w_conv"], (n_conv, Fp, Fp)).astype(jnp.bfloat16)
    b_conv = _pad_to(params["b_conv"], (n_conv, 1, Fp)).astype(jnp.float32)
    # Fold the 1/A mean-pooling scale into w_p2h (ReLU commutes with +scale).
    w_p2h = _pad_to(params["w_p2h"] * (1.0 / A), (Fp, Hp)).astype(jnp.bfloat16)
    b_p2h = _pad_to(params["b_p2h"], (1, Hp)).astype(jnp.float32)
    w_hid = _pad_to(params["w_hid"], (Hp, Hp)).astype(jnp.bfloat16)
    b_hid = _pad_to(params["b_hid"], (1, Hp)).astype(jnp.float32)
    w_out = _pad_to(params["w_out"], (Hp, Op)).astype(jnp.bfloat16)
    b_out = _pad_to(params["b_out"], (1, Op)).astype(jnp.float32)

    kernel = functools.partial(phase_gnn_kernel, n_conv=n_conv,
                               n_hidden=n_hidden, graphs=G, atoms=A)

    def full(shape):
        n = len(shape)
        # TODO(synk): mark these grid-invariant weight specs with
        # pipeline_mode=pl.Buffered(1) when F/H/n_conv grow (halves the
        # resident weight VMEM); moot at these sizes.
        return pl.BlockSpec(shape, lambda b, n=n: (0,) * n)

    inputs = (node_p, adj_bd, inv_n,
              w_init, b_init, w_conv, b_conv,
              w_p2h, b_p2h, w_hid, b_hid, w_out, b_out)

    # Cost estimate (no transcendentals left in-kernel).
    flops = 2 * n_steps * (
        M * Vp * Fp
        + n_conv * (M * Fp * Fp + M * M * Fp)
        + G * Fp * Hp + (n_hidden - 1) * G * Hp * Hp + G * Hp * Op)
    bytes_accessed = (sum(int(a.size) * a.dtype.itemsize for a in inputs)
                      + n_steps * G * Op * 4)

    # Explicit VMEM budget: 2x (double-buffered) actual block footprints + headroom.
    def vmem_bytes(shape, dtype):
        s = list(shape)
        s[-1] = _round_up(s[-1], 128)
        if len(s) >= 2:
            s[-2] = _round_up(s[-2], 8)
        n = 1
        for d in s:
            n *= d
        return n * jnp.dtype(dtype).itemsize

    block_shapes = [
        ((1, M, Vp), jnp.bfloat16), ((1, M, M), jnp.bfloat16),
        ((1, M, 1), jnp.float32),
        ((Vp, Fp), jnp.bfloat16), ((1, Fp), jnp.float32),
        ((n_conv, Fp, Fp), jnp.bfloat16), ((n_conv, 1, Fp), jnp.float32),
        ((Fp, Hp), jnp.bfloat16), ((1, Hp), jnp.float32),
        ((Hp, Hp), jnp.bfloat16), ((1, Hp), jnp.float32),
        ((Hp, Op), jnp.bfloat16), ((1, Op), jnp.float32),
        ((1, G, Op), jnp.float32),
    ]
    vmem_limit = 2 * sum(vmem_bytes(s, d) for s, d in block_shapes) + (8 << 20)
    vmem_limit = max(vmem_limit, 16 << 20)

    out3 = pl.pallas_call(
        kernel,
        out_shape=jax.ShapeDtypeStruct((n_steps, G, Op), jnp.float32),
        grid=(n_steps,),
        in_specs=[
            pl.BlockSpec((1, M, Vp), lambda b: (b, 0, 0)),    # node features
            pl.BlockSpec((1, M, M), lambda b: (b, 0, 0)),     # block-diag adjacency
            pl.BlockSpec((1, M, 1), lambda b: (b, 0, 0)),     # exact 1/degree
            full((Vp, Fp)), full((1, Fp)),                    # init_transform
            full((n_conv, Fp, Fp)), full((n_conv, 1, Fp)),    # conv layers
            full((Fp, Hp)), full((1, Hp)),                    # pooled_to_hidden
            full((Hp, Hp)), full((1, Hp)),                    # hidden_layer (shared)
            full((Hp, Op)), full((1, Op)),                    # hidden_to_output
        ],
        out_specs=pl.BlockSpec((1, G, Op), lambda b: (b, 0, 0)),
        compiler_params=pltpu.CompilerParams(
            dimension_semantics=("parallel",),                # both TCs on v7x
            vmem_limit_bytes=int(vmem_limit)),
        cost_estimate=pl.CostEstimate(
            flops=flops, transcendentals=0, bytes_accessed=bytes_accessed),
    )(*inputs)
    return out3.reshape(Bp, Op)[:B, :O]


def phase_gnn_reference(node_mat, adj_mat, params, *, n_conv, n_hidden):
    """Pure-JAX f32 reference mirroring the PyTorch forward pass."""
    fea = node_mat @ params["w_init"] + params["b_init"]
    n_neigh = adj_mat.sum(axis=-1, keepdims=True)
    for i in range(n_conv):
        h = fea @ params["w_conv"][i] + params["b_conv"][i]
        h = jnp.einsum("bij,bjf->bif", adj_mat, h)
        h = h / n_neigh
        fea = jax.nn.relu(h)
    pooled = jax.nn.relu(fea.mean(axis=1))
    hidden = jax.nn.relu(pooled @ params["w_p2h"] + params["b_p2h"])
    for _ in range(n_hidden - 1):
        hidden = jax.nn.relu(hidden @ params["w_hid"] + params["b_hid"])
    return hidden @ params["w_out"] + params["b_out"]


def init_params(key, node_vec_len, node_fea_len, hidden_fea_len, n_conv, n_outputs):
    """Deterministic uniform(-1/sqrt(fan_in), +1/sqrt(fan_in)) init (PyTorch default)."""
    def lin(k, fan_in, fan_out):
        k1, k2 = jax.random.split(k)
        bound = 1.0 / jnp.sqrt(fan_in)
        w = jax.random.uniform(k1, (fan_in, fan_out), jnp.float32, -bound, bound)
        b = jax.random.uniform(k2, (1, fan_out), jnp.float32, -bound, bound)
        return w, b

    keys = jax.random.split(key, 4 + n_conv)
    w_init, b_init = lin(keys[0], node_vec_len, node_fea_len)
    conv_w, conv_b = [], []
    for i in range(n_conv):
        w, b = lin(keys[1 + i], node_fea_len, node_fea_len)
        conv_w.append(w)
        conv_b.append(b)
    w_p2h, b_p2h = lin(keys[1 + n_conv], node_fea_len, hidden_fea_len)
    w_hid, b_hid = lin(keys[2 + n_conv], hidden_fea_len, hidden_fea_len)
    w_out, b_out = lin(keys[3 + n_conv], hidden_fea_len, n_outputs)
    return {
        "w_init": w_init, "b_init": b_init,
        "w_conv": jnp.stack(conv_w), "b_conv": jnp.stack(conv_b),
        "w_p2h": w_p2h, "b_p2h": b_p2h,
        "w_hid": w_hid, "b_hid": b_hid,
        "w_out": w_out, "b_out": b_out,
    }


if __name__ == "__main__":
    # Small, forward-consistent shapes.
    B, A = 2, 16                 # batch, max_atoms
    node_vec_len = 32
    node_fea_len = 32
    hidden_fea_len = 32
    n_conv, n_hidden, n_outputs = 2, 2, 4
    # p_dropout = 0.0 -> dropout is the identity.
    # TODO(synk): non-zero dropout (training mode) not implemented in-kernel.

    key = jax.random.PRNGKey(0)
    k_node, k_adj, k_param = jax.random.split(key, 3)

    node_mat = jax.random.normal(k_node, (B, A, node_vec_len), jnp.float32)
    # Symmetric binary adjacency with self-loops (guarantees nonzero row sums).
    raw = jax.random.bernoulli(k_adj, 0.3, (B, A, A)).astype(jnp.float32)
    adj_mat = jnp.clip(raw + jnp.transpose(raw, (0, 2, 1)) + jnp.eye(A)[None], 0.0, 1.0)

    params = init_params(k_param, node_vec_len, node_fea_len, hidden_fea_len,
                         n_conv, n_outputs)

    out = phase_gnn_forward(node_mat, adj_mat, params,
                            n_conv=n_conv, n_hidden=n_hidden)
    out = jax.block_until_ready(out)

    ref = phase_gnn_reference(node_mat, adj_mat, params,
                              n_conv=n_conv, n_hidden=n_hidden)
    assert out.shape == (B, n_outputs)
    # bf16 MXU operands (degree normalization is now exact f32) -> loosened
    # tolerance vs the f32 reference.
    assert jnp.allclose(out, ref, atol=5e-2, rtol=5e-2), (out, ref)

    print("KERNEL_OK")
</pallas_src>

<mosaic_0001>
module attributes {stable_mosaic.version = 11 : i64} {
  func.func @phase_gnn_kernel(%arg0: i32, %arg1: memref<1x32x128xbf16, #tpu.memory_space<vmem>>, %arg2: memref<1x32x32xbf16, #tpu.memory_space<vmem>>, %arg3: memref<1x32x1xf32, #tpu.memory_space<vmem>>, %arg4: memref<128x128xbf16, #tpu.memory_space<vmem>>, %arg5: memref<1x128xf32, #tpu.memory_space<vmem>>, %arg6: memref<2x128x128xbf16, #tpu.memory_space<vmem>>, %arg7: memref<2x1x128xf32, #tpu.memory_space<vmem>>, %arg8: memref<128x128xbf16, #tpu.memory_space<vmem>>, %arg9: memref<1x128xf32, #tpu.memory_space<vmem>>, %arg10: memref<128x128xbf16, #tpu.memory_space<vmem>>, %arg11: memref<1x128xf32, #tpu.memory_space<vmem>>, %arg12: memref<128x128xbf16, #tpu.memory_space<vmem>>, %arg13: memref<1x128xf32, #tpu.memory_space<vmem>>, %arg14: memref<1x2x128xf32, #tpu.memory_space<vmem>>) attributes {dimension_semantics = [#tpu.dimension_semantics<parallel>], iteration_bounds = array<i64: 1>, scalar_prefetch = 0 : i64, scratch_operands = 0 : i64, tpu.core_type = #tpu.core_type<tc>, window_params = [{transform_indices = @transform_0, window_bounds = array<i64: 1, 32, 128>}, {transform_indices = @transform_1, window_bounds = array<i64: 1, 32, 32>}, {transform_indices = @transform_2, window_bounds = array<i64: 1, 32, 1>}, {pipeline_mode = #tpu.pipeline_mode<synchronous>, transform_indices = @transform_3, window_bounds = array<i64: 128, 128>}, {pipeline_mode = #tpu.pipeline_mode<synchronous>, transform_indices = @transform_4, window_bounds = array<i64: 1, 128>}, {pipeline_mode = #tpu.pipeline_mode<synchronous>, transform_indices = @transform_5, window_bounds = array<i64: 2, 128, 128>}, {pipeline_mode = #tpu.pipeline_mode<synchronous>, transform_indices = @transform_6, window_bounds = array<i64: 2, 1, 128>}, {pipeline_mode = #tpu.pipeline_mode<synchronous>, transform_indices = @transform_7, window_bounds = array<i64: 128, 128>}, {pipeline_mode = #tpu.pipeline_mode<synchronous>, transform_indices = @transform_8, window_bounds = array<i64: 1, 128>}, {pipeline_mode = #tpu.pipeline_mode<synchronous>, transform_indices = @transform_9, window_bounds = array<i64: 128, 128>}, {pipeline_mode = #tpu.pipeline_mode<synchronous>, transform_indices = @transform_10, window_bounds = array<i64: 1, 128>}, {pipeline_mode = #tpu.pipeline_mode<synchronous>, transform_indices = @transform_11, window_bounds = array<i64: 128, 128>}, {pipeline_mode = #tpu.pipeline_mode<synchronous>, transform_indices = @transform_12, window_bounds = array<i64: 1, 128>}, {transform_indices = @transform_13, window_bounds = array<i64: 1, 2, 128>}]} {
    %c0 = arith.constant 0 : index
    %c0_0 = arith.constant 0 : index
    %c0_1 = arith.constant 0 : index
    %0 = vector.load %arg2[%c0, %c0_0, %c0_1] : memref<1x32x32xbf16, #tpu.memory_space<vmem>>, vector<1x32x32xbf16>
    %1 = vector.shape_cast %0 : vector<1x32x32xbf16> to vector<32x32xbf16>
    %c0_2 = arith.constant 0 : index
    %c0_3 = arith.constant 0 : index
    %c0_4 = arith.constant 0 : index
    %2 = vector.load %arg3[%c0_2, %c0_3, %c0_4] : memref<1x32x1xf32, #tpu.memory_space<vmem>>, vector<1x32x1xf32>
    %3 = vector.shape_cast %2 : vector<1x32x1xf32> to vector<32x1xf32>
    %c0_5 = arith.constant 0 : index
    %c0_6 = arith.constant 0 : index
    %c0_7 = arith.constant 0 : index
    %4 = vector.load %arg1[%c0_5, %c0_6, %c0_7] : memref<1x32x128xbf16, #tpu.memory_space<vmem>>, vector<1x32x128xbf16>
    %5 = vector.shape_cast %4 : vector<1x32x128xbf16> to vector<32x128xbf16>
    %c0_8 = arith.constant 0 : index
    %c0_9 = arith.constant 0 : index
    %6 = vector.load %arg4[%c0_8, %c0_9] : memref<128x128xbf16, #tpu.memory_space<vmem>>, vector<128x128xbf16>
    %cst = arith.constant dense<0.000000e+00> : vector<32x128xf32>
    %7 = tpu.matmul %5, %6, %cst {dimension_numbers = #tpu.dot_dimension_numbers<[1], [0], [0], [1], [0, 0, 1, 1], [], []>} : vector<32x128xbf16>, vector<128x128xbf16>, vector<32x128xf32> -> vector<32x128xf32>
    %c0_10 = arith.constant 0 : index
    %c0_11 = arith.constant 0 : index
    %8 = vector.load %arg5[%c0_10, %c0_11] : memref<1x128xf32, #tpu.memory_space<vmem>>, vector<1x128xf32>
    %9 = vector.broadcast %8 : vector<1x128xf32> to vector<32x128xf32>
    %10 = arith.addf %7, %9 : vector<32x128xf32>
    %11 = arith.truncf %10 : vector<32x128xf32> to vector<32x128xbf16>
    %c0_12 = arith.constant 0 : index
    %c0_13 = arith.constant 0 : index
    %c0_14 = arith.constant 0 : index
    %12 = vector.load %arg6[%c0_12, %c0_13, %c0_14] : memref<2x128x128xbf16, #tpu.memory_space<vmem>>, vector<1x128x128xbf16>
    %13 = vector.shape_cast %12 : vector<1x128x128xbf16> to vector<128x128xbf16>
    %cst_15 = arith.constant dense<0.000000e+00> : vector<32x128xf32>
    %14 = tpu.matmul %11, %13, %cst_15 {dimension_numbers = #tpu.dot_dimension_numbers<[1], [0], [0], [1], [0, 0, 1, 1], [], []>} : vector<32x128xbf16>, vector<128x128xbf16>, vector<32x128xf32> -> vector<32x128xf32>
    %c0_16 = arith.constant 0 : index
    %c0_17 = arith.constant 0 : index
    %c0_18 = arith.constant 0 : index
    %15 = vector.load %arg7[%c0_16, %c0_17, %c0_18] : memref<2x1x128xf32, #tpu.memory_space<vmem>>, vector<1x1x128xf32>
    %16 = vector.shape_cast %15 : vector<1x1x128xf32> to vector<1x128xf32>
    %17 = vector.broadcast %16 : vector<1x128xf32> to vector<32x128xf32>
    %18 = arith.addf %14, %17 : vector<32x128xf32>
    %19 = arith.truncf %18 : vector<32x128xf32> to vector<32x128xbf16>
    %cst_19 = arith.constant dense<0.000000e+00> : vector<32x128xf32>
    %20 = tpu.matmul %1, %19, %cst_19 {dimension_numbers = #tpu.dot_dimension_numbers<[1], [0], [0], [1], [0, 0, 1, 1], [], []>} : vector<32x32xbf16>, vector<32x128xbf16>, vector<32x128xf32> -> vector<32x128xf32>
    %21 = vector.broadcast %3 : vector<32x1xf32> to vector<32x128xf32>
    %22 = arith.mulf %20, %21 : vector<32x128xf32>
    %cst_20 = arith.constant 0.000000e+00 : f32
    %23 = vector.broadcast %cst_20 : f32 to vector<32x128xf32>
    %24 = arith.maximumf %22, %23 : vector<32x128xf32>
    %25 = arith.truncf %24 : vector<32x128xf32> to vector<32x128xbf16>
    %c1 = arith.constant 1 : index
    %c0_21 = arith.constant 0 : index
    %c0_22 = arith.constant 0 : index
    %26 = vector.load %arg6[%c1, %c0_21, %c0_22] : memref<2x128x128xbf16, #tpu.memory_space<vmem>>, vector<1x128x128xbf16>
    %27 = vector.shape_cast %26 : vector<1x128x128xbf16> to vector<128x128xbf16>
    %cst_23 = arith.constant dense<0.000000e+00> : vector<32x128xf32>
    %28 = tpu.matmul %25, %27, %cst_23 {dimension_numbers = #tpu.dot_dimension_numbers<[1], [0], [0], [1], [0, 0, 1, 1], [], []>} : vector<32x128xbf16>, vector<128x128xbf16>, vector<32x128xf32> -> vector<32x128xf32>
    %c1_24 = arith.constant 1 : index
    %c0_25 = arith.constant 0 : index
    %c0_26 = arith.constant 0 : index
    %29 = vector.load %arg7[%c1_24, %c0_25, %c0_26] : memref<2x1x128xf32, #tpu.memory_space<vmem>>, vector<1x1x128xf32>
    %30 = vector.shape_cast %29 : vector<1x1x128xf32> to vector<1x128xf32>
    %31 = vector.broadcast %30 : vector<1x128xf32> to vector<32x128xf32>
    %32 = arith.addf %28, %31 : vector<32x128xf32>
    %33 = arith.truncf %32 : vector<32x128xf32> to vector<32x128xbf16>
    %cst_27 = arith.constant dense<0.000000e+00> : vector<32x128xf32>
    %34 = tpu.matmul %1, %33, %cst_27 {dimension_numbers = #tpu.dot_dimension_numbers<[1], [0], [0], [1], [0, 0, 1, 1], [], []>} : vector<32x32xbf16>, vector<32x128xbf16>, vector<32x128xf32> -> vector<32x128xf32>
    %35 = vector.broadcast %3 : vector<32x1xf32> to vector<32x128xf32>
    %36 = arith.mulf %34, %35 : vector<32x128xf32>
    %cst_28 = arith.constant 0.000000e+00 : f32
    %37 = vector.broadcast %cst_28 : f32 to vector<32x128xf32>
    %38 = arith.maximumf %36, %37 : vector<32x128xf32>
    %39 = vector.shape_cast %38 : vector<32x128xf32> to vector<2x16x128xf32>
    %cst_29 = arith.constant dense<0.000000e+00> : vector<2x128xf32>
    %40 = vector.multi_reduction <add>, %39, %cst_29 [1] : vector<2x16x128xf32> to vector<2x128xf32>
    %cst_30 = arith.constant 0.000000e+00 : f32
    %41 = vector.broadcast %cst_30 : f32 to vector<2x128xf32>
    %42 = arith.maximumf %40, %41 : vector<2x128xf32>
    %43 = arith.truncf %42 : vector<2x128xf32> to vector<2x128xbf16>
    %c0_31 = arith.constant 0 : index
    %c0_32 = arith.constant 0 : index
    %44 = vector.load %arg8[%c0_31, %c0_32] : memref<128x128xbf16, #tpu.memory_space<vmem>>, vector<128x128xbf16>
    %cst_33 = arith.constant dense<0.000000e+00> : vector<2x128xf32>
    %45 = tpu.matmul %43, %44, %cst_33 {dimension_numbers = #tpu.dot_dimension_numbers<[1], [0], [0], [1], [0, 0, 1, 1], [], []>} : vector<2x128xbf16>, vector<128x128xbf16>, vector<2x128xf32> -> vector<2x128xf32>
    %c0_34 = arith.constant 0 : index
    %c0_35 = arith.constant 0 : index
    %46 = vector.load %arg9[%c0_34, %c0_35] : memref<1x128xf32, #tpu.memory_space<vmem>>, vector<1x128xf32>
    %47 = vector.broadcast %46 : vector<1x128xf32> to vector<2x128xf32>
    %48 = arith.addf %45, %47 : vector<2x128xf32>
    %cst_36 = arith.constant 0.000000e+00 : f32
    %49 = vector.broadcast %cst_36 : f32 to vector<2x128xf32>
    %50 = arith.maximumf %48, %49 : vector<2x128xf32>
    %51 = arith.truncf %50 : vector<2x128xf32> to vector<2x128xbf16>
    %c0_37 = arith.constant 0 : index
    %c0_38 = arith.constant 0 : index
    %52 = vector.load %arg10[%c0_37, %c0_38] : memref<128x128xbf16, #tpu.memory_space<vmem>>, vector<128x128xbf16>
    %cst_39 = arith.constant dense<0.000000e+00> : vector<2x128xf32>
    %53 = tpu.matmul %51, %52, %cst_39 {dimension_numbers = #tpu.dot_dimension_numbers<[1], [0], [0], [1], [0, 0, 1, 1], [], []>} : vector<2x128xbf16>, vector<128x128xbf16>, vector<2x128xf32> -> vector<2x128xf32>
    %c0_40 = arith.constant 0 : index
    %c0_41 = arith.constant 0 : index
    %54 = vector.load %arg11[%c0_40, %c0_41] : memref<1x128xf32, #tpu.memory_space<vmem>>, vector<1x128xf32>
    %55 = vector.broadcast %54 : vector<1x128xf32> to vector<2x128xf32>
    %56 = arith.addf %53, %55 : vector<2x128xf32>
    %cst_42 = arith.constant 0.000000e+00 : f32
    %57 = vector.broadcast %cst_42 : f32 to vector<2x128xf32>
    %58 = arith.maximumf %56, %57 : vector<2x128xf32>
    %59 = arith.truncf %58 : vector<2x128xf32> to vector<2x128xbf16>
    %c0_43 = arith.constant 0 : index
    %c0_44 = arith.constant 0 : index
    %60 = vector.load %arg12[%c0_43, %c0_44] : memref<128x128xbf16, #tpu.memory_space<vmem>>, vector<128x128xbf16>
    %cst_45 = arith.constant dense<0.000000e+00> : vector<2x128xf32>
    %61 = tpu.matmul %59, %60, %cst_45 {dimension_numbers = #tpu.dot_dimension_numbers<[1], [0], [0], [1], [0, 0, 1, 1], [], []>} : vector<2x128xbf16>, vector<128x128xbf16>, vector<2x128xf32> -> vector<2x128xf32>
    %c0_46 = arith.constant 0 : index
    %c0_47 = arith.constant 0 : index
    %62 = vector.load %arg13[%c0_46, %c0_47] : memref<1x128xf32, #tpu.memory_space<vmem>>, vector<1x128xf32>
    %63 = vector.broadcast %62 : vector<1x128xf32> to vector<2x128xf32>
    %64 = arith.addf %61, %63 : vector<2x128xf32>
    %c0_48 = arith.constant 0 : index
    %c0_49 = arith.constant 0 : index
    %c0_50 = arith.constant 0 : index
    %65 = vector.load %arg14[%c0_48, %c0_49, %c0_50] : memref<1x2x128xf32, #tpu.memory_space<vmem>>, vector<1x2x128xf32>
    %66 = vector.shape_cast %65 : vector<1x2x128xf32> to vector<2x128xf32>
    %67 = vector.shape_cast %64 : vector<2x128xf32> to vector<1x2x128xf32>
    tpu.vector_store %arg14[%c0_48, %c0_49, %c0_50], %67 {strides = array<i32>} : memref<1x2x128xf32, #tpu.memory_space<vmem>>, vector<1x2x128xf32>,
    return
  }
  func.func @transform_0(%arg0: i32) -> (i32, i32, i32) {
    %c0_i32 = arith.constant 0 : i32
    %c0_i32_0 = arith.constant 0 : i32
    %c0_i32_1 = arith.constant 0 : i32
    return %arg0, %c0_i32, %c0_i32_0 : i32, i32, i32
  }
  func.func @transform_1(%arg0: i32) -> (i32, i32, i32) {
    %c0_i32 = arith.constant 0 : i32
    %c0_i32_0 = arith.constant 0 : i32
    %c0_i32_1 = arith.constant 0 : i32
    return %arg0, %c0_i32, %c0_i32_0 : i32, i32, i32
  }
  func.func @transform_2(%arg0: i32) -> (i32, i32, i32) {
    %c0_i32 = arith.constant 0 : i32
    %c0_i32_0 = arith.constant 0 : i32
    %c0_i32_1 = arith.constant 0 : i32
    return %arg0, %c0_i32, %c0_i32_0 : i32, i32, i32
  }
  func.func @transform_3(%arg0: i32) -> (i32, i32) {
    %c0_i32 = arith.constant 0 : i32
    %c0_i32_0 = arith.constant 0 : i32
    %c0_i32_1 = arith.constant 0 : i32
    return %c0_i32, %c0_i32_0 : i32, i32
  }
  func.func @transform_4(%arg0: i32) -> (i32, i32) {
    %c0_i32 = arith.constant 0 : i32
    %c0_i32_0 = arith.constant 0 : i32
    %c0_i32_1 = arith.constant 0 : i32
    return %c0_i32, %c0_i32_0 : i32, i32
  }
  func.func @transform_5(%arg0: i32) -> (i32, i32, i32) {
    %c0_i32 = arith.constant 0 : i32
    %c0_i32_0 = arith.constant 0 : i32
    %c0_i32_1 = arith.constant 0 : i32
    %c0_i32_2 = arith.constant 0 : i32
    return %c0_i32, %c0_i32_0, %c0_i32_1 : i32, i32, i32
  }
  func.func @transform_6(%arg0: i32) -> (i32, i32, i32) {
    %c0_i32 = arith.constant 0 : i32
    %c0_i32_0 = arith.constant 0 : i32
    %c0_i32_1 = arith.constant 0 : i32
    %c0_i32_2 = arith.constant 0 : i32
    return %c0_i32, %c0_i32_0, %c0_i32_1 : i32, i32, i32
  }
  func.func @transform_7(%arg0: i32) -> (i32, i32) {
    %c0_i32 = arith.constant 0 : i32
    %c0_i32_0 = arith.constant 0 : i32
    %c0_i32_1 = arith.constant 0 : i32
    return %c0_i32, %c0_i32_0 : i32, i32
  }
  func.func @transform_8(%arg0: i32) -> (i32, i32) {
    %c0_i32 = arith.constant 0 : i32
    %c0_i32_0 = arith.constant 0 : i32
    %c0_i32_1 = arith.constant 0 : i32
    return %c0_i32, %c0_i32_0 : i32, i32
  }
  func.func @transform_9(%arg0: i32) -> (i32, i32) {
    %c0_i32 = arith.constant 0 : i32
    %c0_i32_0 = arith.constant 0 : i32
    %c0_i32_1 = arith.constant 0 : i32
    return %c0_i32, %c0_i32_0 : i32, i32
  }
  func.func @transform_10(%arg0: i32) -> (i32, i32) {
    %c0_i32 = arith.constant 0 : i32
    %c0_i32_0 = arith.constant 0 : i32
    %c0_i32_1 = arith.constant 0 : i32
    return %c0_i32, %c0_i32_0 : i32, i32
  }
  func.func @transform_11(%arg0: i32) -> (i32, i32) {
    %c0_i32 = arith.constant 0 : i32
    %c0_i32_0 = arith.constant 0 : i32
    %c0_i32_1 = arith.constant 0 : i32
    return %c0_i32, %c0_i32_0 : i32, i32
  }
  func.func @transform_12(%arg0: i32) -> (i32, i32) {
    %c0_i32 = arith.constant 0 : i32
    %c0_i32_0 = arith.constant 0 : i32
    %c0_i32_1 = arith.constant 0 : i32
    return %c0_i32, %c0_i32_0 : i32, i32
  }
  func.func @transform_13(%arg0: i32) -> (i32, i32, i32) {
    %c0_i32 = arith.constant 0 : i32
    %c0_i32_0 = arith.constant 0 : i32
    %c0_i32_1 = arith.constant 0 : i32
    return %arg0, %c0_i32, %c0_i32_0 : i32, i32, i32
  }
}

</mosaic_0001>

<llo_original>
// kernel: tpu_custom_call.1
$region0: #{tpu_custom_call.1}
  #allocation0 [shape = 'u32[]', space=smem, size = 0x4, offset = 0x4, fixed_abs, tag = 'smem constant byte address 0x4 - core index']
  #allocation1 [shape = 'u32[144,128]{1,0:T(1,128)}', space=vmem, size = 0x12000, scoped, tag = 'internal scratch']
  %s0 = inlined_call_operand.hbm [shape: bf16[1,32,128], index: 0, kind: input, shape index: {}]
  %s1 = inlined_call_operand.hbm [shape: bf16[1,32,32], index: 1, kind: input, shape index: {}]
  %s2 = inlined_call_operand.vmem [shape: f32[1,32,1], index: 2, kind: input, shape index: {}]
  %s3 = inlined_call_operand.hbm [shape: bf16[128,128], index: 3, kind: input, shape index: {}]
  %s4 = inlined_call_operand.vmem [shape: f32[1,128], index: 4, kind: input, shape index: {}]
  %s5 = inlined_call_operand.hbm [shape: bf16[2,128,128], index: 5, kind: input, shape index: {}]
  %s6 = inlined_call_operand.vmem [shape: f32[2,1,128], index: 6, kind: input, shape index: {}]
  %s7 = inlined_call_operand.hbm [shape: bf16[128,128], index: 7, kind: input, shape index: {}]
  %s8 = inlined_call_operand.hbm [shape: f32[1,128], index: 8, kind: input, shape index: {}]
  %s9 = inlined_call_operand.vmem [shape: bf16[128,128], index: 9, kind: input, shape index: {}]
  %s10 = inlined_call_operand.vmem [shape: f32[1,128], index: 10, kind: input, shape index: {}]
  %s11 = inlined_call_operand.hbm [shape: bf16[128,128], index: 11, kind: input, shape index: {}]
  %s12 = inlined_call_operand.vmem [shape: f32[1,128], index: 12, kind: input, shape index: {}]
  %s13 = inlined_call_operand.hbm [shape: f32[1,2,128], index: 13, kind: output, shape index: {}]
  %s14 = sld [smem:[#allocation0]]
  $region90: #{tpu_custom_call.1} parent=0
    _
  %s16 = ssub.s32 1, %s14
  %s17 = scalar_select 0, %s16, %s14
  $region1: #{tpu_custom_call.1} parent=0
    #allocation2 [shape = 'u8[8192]{0}', space=vmem, size = 0x2000, scoped, tag = 'input window, operand 0, single buffered']
    #allocation3 [shape = 's32[1]{0}', space=sflag, size = 0x4, scoped, tag = 'scoped memory for tpu_custom_call.1']
    #allocation4 [shape = 's32[1]{0}', space=sflag, size = 0x4, scoped, tag = 'scoped memory for tpu_custom_call.1']
    #allocation5 [shape = 'u8[8192]{0}', space=vmem, size = 0x2000, scoped, tag = 'input window, operand 1, single buffered']
    #allocation6 [shape = 's32[1]{0}', space=sflag, size = 0x4, scoped, tag = 'scoped memory for tpu_custom_call.1']
    #allocation7 [shape = 'u8[32768]{0}', space=vmem, size = 0x8000, scoped, tag = 'input window, operand 3, single buffered']
    #allocation8 [shape = 'u8[65536]{0}', space=vmem, size = 0x10000, scoped, tag = 'input window, operand 5, single buffered']
    #allocation9 [shape = 's32[1]{0}', space=sflag, size = 0x4, scoped, tag = 'scoped memory for tpu_custom_call.1']
    #allocation10 [shape = 'u8[32768]{0}', space=vmem, size = 0x8000, scoped, tag = 'input window, operand 7, single buffered']
    #allocation11 [shape = 'u8[512]{0}', space=vmem, size = 0x400, scoped, tag = 'input window, operand 8, single buffered']
    #allocation12 [shape = 's32[1]{0}', space=sflag, size = 0x4, scoped, tag = 'scoped memory for tpu_custom_call.1']
    #allocation13 [shape = 'u8[32768]{0}', space=vmem, size = 0x8000, scoped, tag = 'input window, operand 11, single buffered']
    #allocation14 [shape = 'u8[1024]{0}', space=vmem, size = 0x400, scoped, tag = 'output window, operand 0, single buffered']
    %18 = vsyncpa [#allocation3], 0
    %19 = vsyncpa [#allocation6], 0
    %20 = vsyncpa [#allocation9], 0
    %21 = vsyncpa [#allocation12], 0
    %22 = vsyncpa [#allocation4], 0
    // Predicated region
    $region2: #{tpu_custom_call.1} parent=1 // pred_check
      _
    $region3: #{tpu_custom_call.1} parent=1 // pred_check_branch
      %24 = sbr.rel (0) target = $region5
    $region4: #{tpu_custom_call.1} parent=1 // pred_region
      %s26 = ssub.s32 256, 256
      %27 = vsyncadd [#allocation3], %s26
      %s28 = sshll.u32 [#allocation2], 4
      %s29 = int_to_ptr.vmem [resolvable:$true] %s28
      %34 = dma.hbm_to_vmem [thread:$0]  %s0, 256, %s29, [#allocation3], 64, 64, 4
    $region5: #{tpu_custom_call.1} parent=1 // pred_fallthru
      _
    // Predicated region
    $region6: #{tpu_custom_call.1} parent=1 // pred_check
      _
    $region7: #{tpu_custom_call.1} parent=1 // pred_check_branch
      %36 = sbr.rel (0) target = $region9
    $region8: #{tpu_custom_call.1} parent=1 // pred_region
      %s38 = ssub.s32 256, 256
      %39 = vsyncadd [#allocation6], %s38
      %s40 = sshll.u32 [#allocation5], 4
      %s41 = int_to_ptr.vmem [resolvable:$true] %s40
      %46 = dma.hbm_to_vmem [thread:$0]  %s1, 256, %s41, [#allocation6], 64, 64, 4
    $region9: #{tpu_custom_call.1} parent=1 // pred_fallthru
      _
    // Predicated region
    $region10: #{tpu_custom_call.1} parent=1 // pred_check
      _
    $region11: #{tpu_custom_call.1} parent=1 // pred_check_branch
      %48 = sbr.rel (0) target = $region13
    $region12: #{tpu_custom_call.1} parent=1 // pred_region
      _
    $region13: #{tpu_custom_call.1} parent=1 // pred_fallthru
      _
    // Predicated region
    $region14: #{tpu_custom_call.1} parent=1 // pred_check
      _
    $region15: #{tpu_custom_call.1} parent=1 // pred_check_branch
      %50 = sbr.rel (0) target = $region17
    $region16: #{tpu_custom_call.1} parent=1 // pred_region
      %s52 = ssub.s32 1024, 1024
      %53 = vsyncadd [#allocation6], %s52
      %s54 = sshll.u32 [#allocation7], 4
      %s55 = int_to_ptr.vmem [resolvable:$true] %s54
      %60 = dma.hbm_to_vmem [thread:$0]  %s3, 1024, %s55, [#allocation6], 64, 64, 4
    $region17: #{tpu_custom_call.1} parent=1 // pred_fallthru
      _
    // Predicated region
    $region18: #{tpu_custom_call.1} parent=1 // pred_check
      _
    $region19: #{tpu_custom_call.1} parent=1 // pred_check_branch
      %62 = sbr.rel (0) target = $region21
    $region20: #{tpu_custom_call.1} parent=1 // pred_region
      _
    $region21: #{tpu_custom_call.1} parent=1 // pred_fallthru
      _
    // Predicated region
    $region22: #{tpu_custom_call.1} parent=1 // pred_check
      _
    $region23: #{tpu_custom_call.1} parent=1 // pred_check_branch
      %64 = sbr.rel (0) target = $region25
    $region24: #{tpu_custom_call.1} parent=1 // pred_region
      %s66 = ssub.s32 2048, 2048
      %67 = vsyncadd [#allocation9], %s66
      %s68 = sshll.u32 [#allocation8], 4
      %s69 = int_to_ptr.vmem [resolvable:$true] %s68
      %74 = dma.hbm_to_vmem [thread:$0]  %s5, 2048, %s69, [#allocation9], 64, 64, 4
    $region25: #{tpu_custom_call.1} parent=1 // pred_fallthru
      _
    // Predicated region
    $region26: #{tpu_custom_call.1} parent=1 // pred_check
      _
    $region27: #{tpu_custom_call.1} parent=1 // pred_check_branch
      %76 = sbr.rel (0) target = $region29
    $region28: #{tpu_custom_call.1} parent=1 // pred_region
      _
    $region29: #{tpu_custom_call.1} parent=1 // pred_fallthru
      _
    // Predicated region
    $region30: #{tpu_custom_call.1} parent=1 // pred_check
      _
    $region31: #{tpu_custom_call.1} parent=1 // pred_check_branch
      %78 = sbr.rel (0) target = $region33
    $region32: #{tpu_custom_call.1} parent=1 // pred_region
      %s80 = ssub.s32 1024, 1024
      %81 = vsyncadd [#allocation9], %s80
      %s82 = sshll.u32 [#allocation10], 4
      %s83 = int_to_ptr.vmem [resolvable:$true] %s82
      %88 = dma.hbm_to_vmem [thread:$0]  %s7, 1024, %s83, [#allocation9], 64, 64, 4
    $region33: #{tpu_custom_call.1} parent=1 // pred_fallthru
      _
    // Predicated region
    $region34: #{tpu_custom_call.1} parent=1 // pred_check
      _
    $region35: #{tpu_custom_call.1} parent=1 // pred_check_branch
      %90 = sbr.rel (0) target = $region37
    $region36: #{tpu_custom_call.1} parent=1 // pred_region
      %s92 = ssub.s32 16, 16
      %93 = vsyncadd [#allocation12], %s92
      %s95 = sshll.u32 [#allocation11], 4
      %s96 = int_to_ptr.vmem [resolvable:$true] %s95
      %98 = dma.hbm_to_vmem [thread:$0]  %s8, 16, %s96, [#allocation12]
    $region37: #{tpu_custom_call.1} parent=1 // pred_fallthru
      _
    // Predicated region
    $region38: #{tpu_custom_call.1} parent=1 // pred_check
      _
    $region39: #{tpu_custom_call.1} parent=1 // pred_check_branch
      %100 = sbr.rel (0) target = $region41
    $region40: #{tpu_custom_call.1} parent=1 // pred_region
      _
    $region41: #{tpu_custom_call.1} parent=1 // pred_fallthru
      _
    // Predicated region
    $region42: #{tpu_custom_call.1} parent=1 // pred_check
      _
    $region43: #{tpu_custom_call.1} parent=1 // pred_check_branch
      %102 = sbr.rel (0) target = $region45
    $region44: #{tpu_custom_call.1} parent=1 // pred_region
      _
    $region45: #{tpu_custom_call.1} parent=1 // pred_fallthru
      _
    // Predicated region
    $region46: #{tpu_custom_call.1} parent=1 // pred_check
      _
    $region47: #{tpu_custom_call.1} parent=1 // pred_check_branch
      %104 = sbr.rel (0) target = $region49
    $region48: #{tpu_custom_call.1} parent=1 // pred_region
      %s106 = ssub.s32 1024, 1024
      %107 = vsyncadd [#allocation12], %s106
      %s108 = sshll.u32 [#allocation13], 4
      %s109 = int_to_ptr.vmem [resolvable:$true] %s108
      %114 = dma.hbm_to_vmem [thread:$0]  %s11, 1024, %s109, [#allocation12], 64, 64, 4
    $region49: #{tpu_custom_call.1} parent=1 // pred_fallthru
      _
    // Predicated region
    $region50: #{tpu_custom_call.1} parent=1 // pred_check
      _
    $region51: #{tpu_custom_call.1} parent=1 // pred_check_branch
      %116 = sbr.rel (0) target = $region53
    $region52: #{tpu_custom_call.1} parent=1 // pred_region
      _
    $region53: #{tpu_custom_call.1} parent=1 // pred_fallthru
      _
    // Predicated region
    $region54: #{tpu_custom_call.1} parent=1 // pred_check
      _
    $region55: #{tpu_custom_call.1} parent=1 // pred_check_branch
      %118 = sbr.rel (0) target = $region57
    $region56: #{tpu_custom_call.1} parent=1 // pred_region
      %119 = dma.done [#allocation3], 256
    $region57: #{tpu_custom_call.1} parent=1 // pred_fallthru
      _
    // Predicated region
    $region58: #{tpu_custom_call.1} parent=1 // pred_check
      _
    $region59: #{tpu_custom_call.1} parent=1 // pred_check_branch
      %121 = sbr.rel (0) target = $region61
    $region60: #{tpu_custom_call.1} parent=1 // pred_region
      %122 = dma.done [#allocation6], 256
    $region61: #{tpu_custom_call.1} parent=1 // pred_fallthru
      _
    // Predicated region
    $region62: #{tpu_custom_call.1} parent=1 // pred_check
      _
    $region63: #{tpu_custom_call.1} parent=1 // pred_check_branch
      %124 = sbr.rel (0) target = $region65
    $region64: #{tpu_custom_call.1} parent=1 // pred_region
      %125 = dma.done [#allocation6], 1024
    $region65: #{tpu_custom_call.1} parent=1 // pred_fallthru
      _
    // Predicated region
    $region66: #{tpu_custom_call.1} parent=1 // pred_check
      _
    $region67: #{tpu_custom_call.1} parent=1 // pred_check_branch
      %127 = sbr.rel (0) target = $region69
    $region68: #{tpu_custom_call.1} parent=1 // pred_region
      %128 = dma.done [#allocation9], 2048
    $region69: #{tpu_custom_call.1} parent=1 // pred_fallthru
      _
    // Predicated region
    $region70: #{tpu_custom_call.1} parent=1 // pred_check
      _
    $region71: #{tpu_custom_call.1} parent=1 // pred_check_branch
      %130 = sbr.rel (0) target = $region73
    $region72: #{tpu_custom_call.1} parent=1 // pred_region
      %131 = dma.done [#allocation9], 1024
    $region73: #{tpu_custom_call.1} parent=1 // pred_fallthru
      _
    // Predicated region
    $region74: #{tpu_custom_call.1} parent=1 // pred_check
      _
    $region75: #{tpu_custom_call.1} parent=1 // pred_check_branch
      %133 = sbr.rel (0) target = $region77
    $region76: #{tpu_custom_call.1} parent=1 // pred_region
      %134 = dma.done [#allocation12], 16
    $region77: #{tpu_custom_call.1} parent=1 // pred_fallthru
      _
    // Predicated region
    $region78: #{tpu_custom_call.1} parent=1 // pred_check
      _
    $region79: #{tpu_custom_call.1} parent=1 // pred_check_branch
      %136 = sbr.rel (0) target = $region81
    $region80: #{tpu_custom_call.1} parent=1 // pred_region
      %137 = dma.done [#allocation12], 1024
    $region81: #{tpu_custom_call.1} parent=1 // pred_fallthru
      _
    %v139 = vld [vmem:[#allocation5] sm:$0xf]
    %v140 = vld [vmem:[#allocation5 + $0x4] sm:$0xf]
    %v141 = vld [vmem:[#allocation5 + $0x8] sm:$0xf]
    %v142 = vld [vmem:[#allocation5 + $0xc] sm:$0xf]
    %v143 = vld [vmem:[%s2] sm:$0xff]
    %v144 = vld [vmem:[%s2 + $0x8] sm:$0xff]
    %v145 = vld [vmem:[%s2 + $0x10] sm:$0xff]
    %v146 = vld [vmem:[%s2 + $0x18] sm:$0xff]
    %v147 = vld [vmem:[#allocation2] sm:$0xf]
    %v148 = vld [vmem:[#allocation2 + $0x4] sm:$0xf]
    %v149 = vld [vmem:[#allocation2 + $0x8] sm:$0xf]
    %v150 = vld [vmem:[#allocation2 + $0xc] sm:$0xf]
    %v151 = vld [vmem:[#allocation7] sm:$0xf]
    %v152 = vld [vmem:[#allocation7 + $0x4] sm:$0xf]
    %v153 = vld [vmem:[#allocation7 + $0x8] sm:$0xf]
    %v154 = vld [vmem:[#allocation7 + $0xc] sm:$0xf]
    %v155 = vld [vmem:[#allocation7 + $0x10] sm:$0xf]
    %v156 = vld [vmem:[#allocation7 + $0x14] sm:$0xf]
    %v157 = vld [vmem:[#allocation7 + $0x18] sm:$0xf]
    %v158 = vld [vmem:[#allocation7 + $0x1c] sm:$0xf]
    %v159 = vld [vmem:[#allocation7 + $0x20] sm:$0xf]
    %v160 = vld [vmem:[#allocation7 + $0x24] sm:$0xf]
    %v161 = vld [vmem:[#allocation7 + $0x28] sm:$0xf]
    %v162 = vld [vmem:[#allocation7 + $0x2c] sm:$0xf]
    %v163 = vld [vmem:[#allocation7 + $0x30] sm:$0xf]
    %v164 = vld [vmem:[#allocation7 + $0x34] sm:$0xf]
    %v165 = vld [vmem:[#allocation7 + $0x38] sm:$0xf]
    %v166 = vld [vmem:[#allocation7 + $0x3c] sm:$0xf]
    %v167 = vld [vmem:[%s4] sm:$0x1]
    %v169 = vlaneseq
    %v170 = vshrl.u32 %v169, 7
    %v171 = vsub.s32 0, %v170
    %v172 = vrot.slane %v167, %v171
    %v178 = vunpack.c.l.b16 %v147
    %v179 = vunpack.c.l.b16 %v148
    %v180 = vunpack.c.l.b16 %v149
    %v181 = vunpack.c.l.b16 %v150
    %v182 = vpack.c.b16 %v179, %v178
    %v183 = vpack.c.b16 %v181, %v180
    %v202 = vunpack.c.l.b16 %v151
    %v203 = vunpack.c.l.b16 %v152
    %v204 = vunpack.c.l.b16 %v153
    %v205 = vunpack.c.l.b16 %v154
    %v206 = vunpack.c.l.b16 %v155
    %v207 = vunpack.c.l.b16 %v156
    %v208 = vunpack.c.l.b16 %v157
    %v209 = vunpack.c.l.b16 %v158
    %v210 = vunpack.c.l.b16 %v159
    %v211 = vunpack.c.l.b16 %v160
    %v212 = vunpack.c.l.b16 %v161
    %v213 = vunpack.c.l.b16 %v162
    %v214 = vunpack.c.l.b16 %v163
    %v215 = vunpack.c.l.b16 %v164
    %v216 = vunpack.c.l.b16 %v165
    %v217 = vunpack.c.l.b16 %v166
    %v218 = vpack.c.b16 %v203, %v202
    %v219 = vpack.c.b16 %v205, %v204
    %v220 = vpack.c.b16 %v207, %v206
    %v221 = vpack.c.b16 %v209, %v208
    %v222 = vpack.c.b16 %v211, %v210
    %v223 = vpack.c.b16 %v213, %v212
    %v224 = vpack.c.b16 %v215, %v214
    %v225 = vpack.c.b16 %v217, %v216
    %234 = vmatprep.subr.bf16.mxu0 0
    %235 = vmatpush1.bf16.msra.mxu0 %v218
    %236 = vmatprep.subr.bf16.mxu0 0
    %237 = vmatpush1.bf16.msra.mxu0 %v219
    %238 = vmatprep.subr.bf16.mxu0 0
    %239 = vmatpush1.bf16.msra.mxu0 %v220
    %240 = vmatprep.subr.bf16.mxu0 0
    %241 = vmatpush1.bf16.msra.mxu0 %v221
    %242 = vmatprep.subr.bf16.mxu0 0
    %243 = vmatpush1.bf16.msra.mxu0 %v222
    %244 = vmatprep.subr.bf16.mxu0 0
    %245 = vmatpush1.bf16.msra.mxu0 %v223
    %246 = vmatprep.subr.bf16.mxu0 0
    %247 = vmatpush1.bf16.msra.mxu0 %v224
    %248 = vmatprep.subr.bf16.mxu0 0
    %249 = vmatpush1.bf16.msra.mxu0 %v225
    %250 = vmatprep.subr.bf16.mxu0 0
    %251 = vmatpush1.bf16.msra.mxu0 0
    %252 = vmatprep.subr.bf16.mxu0 0
    %253 = vmatpush1.bf16.msra.mxu0 0
    %254 = vmatprep.subr.bf16.mxu0 0
    %255 = vmatpush1.bf16.msra.mxu0 0
    %256 = vmatprep.subr.bf16.mxu0 0
    %257 = vmatpush1.bf16.msra.mxu0 0
    %258 = vmatprep.subr.bf16.mxu0 0
    %259 = vmatpush1.bf16.msra.mxu0 0
    %260 = vmatprep.subr.bf16.mxu0 0
    %261 = vmatpush1.bf16.msra.mxu0 0
    %262 = vmatprep.subr.bf16.mxu0 0
    %263 = vmatpush1.bf16.msra.mxu0 0
    %264 = vmatprep.subr.bf16.mxu0 0
    %265 = vmatpush1.bf16.msra.mxu0 0
    %266 = vmatprep.mubr.bf16.mxu0 0
    %267 = vmatmul.mubr.bf16.gmra.mrb[0].mxu0 %v182
    %v268 = vpop.f32.mrb[0].mxu0
    %v269 = vadd.f32 %v172, %v268
    %v270 = vpop.f32.mrb[0].mxu0
    %v271 = vpop.f32.mrb[0].mxu0
    %v272 = vadd.f32 %v172, %v271
    %v273 = vpop.f32.mrb[0].mxu0
    %274 = vmatprep.mubr.bf16.mxu0 0
    %275 = vmatmul.mubr.bf16.gmra.mrb[0].mxu0 %v183
    %v276 = vpop.f32.mrb[0].mxu0
    %v277 = vadd.f32 %v172, %v276
    %v278 = vpop.f32.mrb[0].mxu0
    %v279 = vpop.f32.mrb[0].mxu0
    %v280 = vadd.f32 %v172, %v279
    %v281 = vpop.f32.mrb[0].mxu0
    %282 = vdwg.mxu0
    %v283 = vpack.c.bf16 %v272, %v269
    %v284 = vpack.c.bf16 %v280, %v277
    %v285 = vld [vmem:[#allocation8] sm:$0xf]
    %v286 = vld [vmem:[#allocation8 + $0x4] sm:$0xf]
    %v287 = vld [vmem:[#allocation8 + $0x8] sm:$0xf]
    %v288 = vld [vmem:[#allocation8 + $0xc] sm:$0xf]
    %v289 = vld [vmem:[#allocation8 + $0x10] sm:$0xf]
    %v290 = vld [vmem:[#allocation8 + $0x14] sm:$0xf]
    %v291 = vld [vmem:[#allocation8 + $0x18] sm:$0xf]
    %v292 = vld [vmem:[#allocation8 + $0x1c] sm:$0xf]
    %v293 = vld [vmem:[#allocation8 + $0x20] sm:$0xf]
    %v294 = vld [vmem:[#allocation8 + $0x24] sm:$0xf]
    %v295 = vld [vmem:[#allocation8 + $0x28] sm:$0xf]
    %v296 = vld [vmem:[#allocation8 + $0x2c] sm:$0xf]
    %v297 = vld [vmem:[#allocation8 + $0x30] sm:$0xf]
    %v298 = vld [vmem:[#allocation8 + $0x34] sm:$0xf]
    %v299 = vld [vmem:[#allocation8 + $0x38] sm:$0xf]
    %v300 = vld [vmem:[#allocation8 + $0x3c] sm:$0xf]
    %v301 = vld [vmem:[%s6] sm:$0x1]
    %v303 = vlaneseq
    %v304 = vshrl.u32 %v303, 7
    %v305 = vsub.s32 0, %v304
    %v306 = vrot.slane %v301, %v305
    %v324 = vunpack.c.l.b16 %v285
    %v325 = vunpack.c.l.b16 %v286
    %v326 = vunpack.c.l.b16 %v287
    %v327 = vunpack.c.l.b16 %v288
    %v328 = vunpack.c.l.b16 %v289
    %v329 = vunpack.c.l.b16 %v290
    %v330 = vunpack.c.l.b16 %v291
    %v331 = vunpack.c.l.b16 %v292
    %v332 = vunpack.c.l.b16 %v293
    %v333 = vunpack.c.l.b16 %v294
    %v334 = vunpack.c.l.b16 %v295
    %v335 = vunpack.c.l.b16 %v296
    %v336 = vunpack.c.l.b16 %v297
    %v337 = vunpack.c.l.b16 %v298
    %v338 = vunpack.c.l.b16 %v299
    %v339 = vunpack.c.l.b16 %v300
    %v340 = vpack.c.b16 %v325, %v324
    %v341 = vpack.c.b16 %v327, %v326
    %v342 = vpack.c.b16 %v329, %v328
    %v343 = vpack.c.b16 %v331, %v330
    %v344 = vpack.c.b16 %v333, %v332
    %v345 = vpack.c.b16 %v335, %v334
    %v346 = vpack.c.b16 %v337, %v336
    %v347 = vpack.c.b16 %v339, %v338
    %356 = vmatprep.subr.bf16.mxu0 0
    %357 = vmatpush1.bf16.msra.mxu0 %v340
    %358 = vmatprep.subr.bf16.mxu0 0
    %359 = vmatpush1.bf16.msra.mxu0 %v341
    %360 = vmatprep.subr.bf16.mxu0 0
    %361 = vmatpush1.bf16.msra.mxu0 %v342
    %362 = vmatprep.subr.bf16.mxu0 0
    %363 = vmatpush1.bf16.msra.mxu0 %v343
    %364 = vmatprep.subr.bf16.mxu0 0
    %365 = vmatpush1.bf16.msra.mxu0 %v344
    %366 = vmatprep.subr.bf16.mxu0 0
    %367 = vmatpush1.bf16.msra.mxu0 %v345
    %368 = vmatprep.subr.bf16.mxu0 0
    %369 = vmatpush1.bf16.msra.mxu0 %v346
    %370 = vmatprep.subr.bf16.mxu0 0
    %371 = vmatpush1.bf16.msra.mxu0 %v347
    %372 = vmatprep.subr.bf16.mxu0 0
    %373 = vmatpush1.bf16.msra.mxu0 0
    %374 = vmatprep.subr.bf16.mxu0 0
    %375 = vmatpush1.bf16.msra.mxu0 0
    %376 = vmatprep.subr.bf16.mxu0 0
    %377 = vmatpush1.bf16.msra.mxu0 0
    %378 = vmatprep.subr.bf16.mxu0 0
    %379 = vmatpush1.bf16.msra.mxu0 0
    %380 = vmatprep.subr.bf16.mxu0 0
    %381 = vmatpush1.bf16.msra.mxu0 0
    %382 = vmatprep.subr.bf16.mxu0 0
    %383 = vmatpush1.bf16.msra.mxu0 0
    %384 = vmatprep.subr.bf16.mxu0 0
    %385 = vmatpush1.bf16.msra.mxu0 0
    %386 = vmatprep.subr.bf16.mxu0 0
    %387 = vmatpush1.bf16.msra.mxu0 0
    %388 = vmatprep.mubr.bf16.mxu0 0
    %389 = vmatmul.mubr.bf16.gmra.mrb[0].mxu0 %v283
    %v390 = vpop.f32.mrb[0].mxu0
    %v391 = vadd.f32 %v306, %v390
    %v392 = vpop.f32.mrb[0].mxu0
    %v393 = vpop.f32.mrb[0].mxu0
    %v394 = vadd.f32 %v306, %v393
    %v395 = vpop.f32.mrb[0].mxu0
    %396 = vmatprep.mubr.bf16.mxu0 0
    %397 = vmatmul.mubr.bf16.gmra.mrb[0].mxu0 %v284
    %v398 = vpop.f32.mrb[0].mxu0
    %v399 = vadd.f32 %v306, %v398
    %v400 = vpop.f32.mrb[0].mxu0
    %v401 = vpop.f32.mrb[0].mxu0
    %v402 = vadd.f32 %v306, %v401
    %v403 = vpop.f32.mrb[0].mxu0
    %404 = vdwg.mxu0
    %v405 = vpack.c.bf16 %v394, %v391
    %v406 = vpack.c.bf16 %v402, %v399
    %v411 = vunpack.c.l.b16 %v139
    %v412 = vunpack.c.l.b16 %v140
    %v413 = vunpack.c.l.b16 %v141
    %v414 = vunpack.c.l.b16 %v142
    %v415 = vpack.c.b16 %v412, %v411
    %v416 = vpack.c.b16 %v414, %v413
    %vm417 = vcmask 261120
    %v419 = vsel %vm417, %v415, 0
    %v422 = vsel %vm417, %v416, 0
    %424 = vmatprep.subr.bf16.mxu0 0
    %425 = vmatpush1.bf16.msra.mxu0 %v405
    %426 = vmatprep.subr.bf16.mxu0 0
    %427 = vmatpush1.bf16.msra.mxu0 %v406
    %428 = vmatprep.subr.bf16.mxu0 0
    %429 = vmatpush1.bf16.msra.mxu0 0
    %430 = vmatprep.subr.bf16.mxu0 0
    %431 = vmatpush1.bf16.msra.mxu0 0
    %432 = vmatprep.subr.bf16.mxu0 0
    %433 = vmatpush1.bf16.msra.mxu0 0
    %434 = vmatprep.subr.bf16.mxu0 0
    %435 = vmatpush1.bf16.msra.mxu0 0
    %436 = vmatprep.subr.bf16.mxu0 0
    %437 = vmatpush1.bf16.msra.mxu0 0
    %438 = vmatprep.subr.bf16.mxu0 0
    %439 = vmatpush1.bf16.msra.mxu0 0
    %440 = vmatprep.subr.bf16.mxu0 0
    %441 = vmatpush1.bf16.msra.mxu0 0
    %442 = vmatprep.subr.bf16.mxu0 0
    %443 = vmatpush1.bf16.msra.mxu0 0
    %444 = vmatprep.subr.bf16.mxu0 0
    %445 = vmatpush1.bf16.msra.mxu0 0
    %446 = vmatprep.subr.bf16.mxu0 0
    %447 = vmatpush1.bf16.msra.mxu0 0
    %448 = vmatprep.subr.bf16.mxu0 0
    %449 = vmatpush1.bf16.msra.mxu0 0
    %450 = vmatprep.subr.bf16.mxu0 0
    %451 = vmatpush1.bf16.msra.mxu0 0
    %452 = vmatprep.subr.bf16.mxu0 0
    %453 = vmatpush1.bf16.msra.mxu0 0
    %454 = vmatprep.subr.bf16.mxu0 0
    %455 = vmatpush1.bf16.msra.mxu0 0
    %456 = vmatprep.mubr.bf16.mxu0 0
    %457 = vmatmul.mubr.bf16.gmra.mrb[0].mxu0 %v419
    %v458 = vpop.f32.mrb[0].mxu0
    %v459 = vadd.f32 0.0, %v458
    %v460 = vpop.f32.mrb[0].mxu0
    %v461 = vpop.f32.mrb[0].mxu0
    %v462 = vadd.f32 0.0, %v461
    %v463 = vpop.f32.mrb[0].mxu0
    %464 = vmatprep.mubr.bf16.mxu0 0
    %465 = vmatmul.mubr.bf16.gmra.mrb[0].mxu0 %v422
    %v466 = vpop.f32.mrb[0].mxu0
    %v467 = vadd.f32 0.0, %v466
    %v468 = vpop.f32.mrb[0].mxu0
    %v469 = vpop.f32.mrb[0].mxu0
    %v470 = vadd.f32 0.0, %v469
    %v471 = vpop.f32.mrb[0].mxu0
    %472 = vdwg.mxu0
    %474 = vset.pattern.permute.xlu0 0
    %475 = vperm.xlu0 %474, %v143
    %v476 = vpop.permute.xlu0 %475
    %479 = vset.pattern.permute.xlu0 0
    %480 = vperm.xlu0 %479, %v144
    %v481 = vpop.permute.xlu0 %480
    %484 = vset.pattern.permute.xlu0 0
    %485 = vperm.xlu0 %484, %v145
    %v486 = vpop.permute.xlu0 %485
    %489 = vset.pattern.permute.xlu0 0
    %490 = vperm.xlu0 %489, %v146
    %v491 = vpop.permute.xlu0 %490
    %v493 = vmul.f32 %v459, %v476
    %v494 = vmul.f32 %v462, %v481
    %v495 = vmul.f32 %v467, %v486
    %v496 = vmul.f32 %v470, %v491
    %v497 = vmax.f32 %v493, 0.0
    %v498 = vmax.f32 %v494, 0.0
    %v499 = vmax.f32 %v495, 0.0
    %v500 = vmax.f32 %v496, 0.0
    %v501 = vpack.c.bf16 %v498, %v497
    %v502 = vpack.c.bf16 %v500, %v499
    %s503 = scalar_lea.vmem [#allocation8], 64
    %v504 = vld [vmem:[%s503] sm:$0xf]
    %v505 = vld [vmem:[%s503 + $0x4] sm:$0xf]
    %v506 = vld [vmem:[%s503 + $0x8] sm:$0xf]
    %v507 = vld [vmem:[%s503 + $0xc] sm:$0xf]
    %v508 = vld [vmem:[%s503 + $0x10] sm:$0xf]
    %v509 = vld [vmem:[%s503 + $0x14] sm:$0xf]
    %v510 = vld [vmem:[%s503 + $0x18] sm:$0xf]
    %v511 = vld [vmem:[%s503 + $0x1c] sm:$0xf]
    %v512 = vld [vmem:[%s503 + $0x20] sm:$0xf]
    %v513 = vld [vmem:[%s503 + $0x24] sm:$0xf]
    %v514 = vld [vmem:[%s503 + $0x28] sm:$0xf]
    %v515 = vld [vmem:[%s503 + $0x2c] sm:$0xf]
    %v516 = vld [vmem:[%s503 + $0x30] sm:$0xf]
    %v517 = vld [vmem:[%s503 + $0x34] sm:$0xf]
    %v518 = vld [vmem:[%s503 + $0x38] sm:$0xf]
    %v519 = vld [vmem:[%s503 + $0x3c] sm:$0xf]
    %s520 = scalar_lea.vmem %s6, 1
    %v521 = vld [vmem:[%s520] sm:$0x1]
    %v523 = vlaneseq
    %v524 = vshrl.u32 %v523, 7
    %v525 = vsub.s32 0, %v524
    %v526 = vrot.slane %v521, %v525
    %v544 = vunpack.c.l.b16 %v504
    %v545 = vunpack.c.l.b16 %v505
    %v546 = vunpack.c.l.b16 %v506
    %v547 = vunpack.c.l.b16 %v507
    %v548 = vunpack.c.l.b16 %v508
    %v549 = vunpack.c.l.b16 %v509
    %v550 = vunpack.c.l.b16 %v510
    %v551 = vunpack.c.l.b16 %v511
    %v552 = vunpack.c.l.b16 %v512
    %v553 = vunpack.c.l.b16 %v513
    %v554 = vunpack.c.l.b16 %v514
    %v555 = vunpack.c.l.b16 %v515
    %v556 = vunpack.c.l.b16 %v516
    %v557 = vunpack.c.l.b16 %v517
    %v558 = vunpack.c.l.b16 %v518
    %v559 = vunpack.c.l.b16 %v519
    %v560 = vpack.c.b16 %v545, %v544
    %v561 = vpack.c.b16 %v547, %v546
    %v562 = vpack.c.b16 %v549, %v548
    %v563 = vpack.c.b16 %v551, %v550
    %v564 = vpack.c.b16 %v553, %v552
    %v565 = vpack.c.b16 %v555, %v554
    %v566 = vpack.c.b16 %v557, %v556
    %v567 = vpack.c.b16 %v559, %v558
    %576 = vmatprep.subr.bf16.mxu0 0
    %577 = vmatpush1.bf16.msra.mxu0 %v560
    %578 = vmatprep.subr.bf16.mxu0 0
    %579 = vmatpush1.bf16.msra.mxu0 %v561
    %580 = vmatprep.subr.bf16.mxu0 0
    %581 = vmatpush1.bf16.msra.mxu0 %v562
    %582 = vmatprep.subr.bf16.mxu0 0
    %583 = vmatpush1.bf16.msra.mxu0 %v563
    %584 = vmatprep.subr.bf16.mxu0 0
    %585 = vmatpush1.bf16.msra.mxu0 %v564
    %586 = vmatprep.subr.bf16.mxu0 0
    %587 = vmatpush1.bf16.msra.mxu0 %v565
    %588 = vmatprep.subr.bf16.mxu0 0
    %589 = vmatpush1.bf16.msra.mxu0 %v566
    %590 = vmatprep.subr.bf16.mxu0 0
    %591 = vmatpush1.bf16.msra.mxu0 %v567
    %592 = vmatprep.subr.bf16.mxu0 0
    %593 = vmatpush1.bf16.msra.mxu0 0
    %594 = vmatprep.subr.bf16.mxu0 0
    %595 = vmatpush1.bf16.msra.mxu0 0
    %596 = vmatprep.subr.bf16.mxu0 0
    %597 = vmatpush1.bf16.msra.mxu0 0
    %598 = vmatprep.subr.bf16.mxu0 0
    %599 = vmatpush1.bf16.msra.mxu0 0
    %600 = vmatprep.subr.bf16.mxu0 0
    %601 = vmatpush1.bf16.msra.mxu0 0
    %602 = vmatprep.subr.bf16.mxu0 0
    %603 = vmatpush1.bf16.msra.mxu0 0
    %604 = vmatprep.subr.bf16.mxu0 0
    %605 = vmatpush1.bf16.msra.mxu0 0
    %606 = vmatprep.subr.bf16.mxu0 0
    %607 = vmatpush1.bf16.msra.mxu0 0
    %608 = vmatprep.mubr.bf16.mxu0 0
    %609 = vmatmul.mubr.bf16.gmra.mrb[0].mxu0 %v501
    %v610 = vpop.f32.mrb[0].mxu0
    %v611 = vadd.f32 %v526, %v610
    %v612 = vpop.f32.mrb[0].mxu0
    %v613 = vpop.f32.mrb[0].mxu0
    %v614 = vadd.f32 %v526, %v613
    %v615 = vpop.f32.mrb[0].mxu0
    %616 = vmatprep.mubr.bf16.mxu0 0
    %617 = vmatmul.mubr.bf16.gmra.mrb[0].mxu0 %v502
    %v618 = vpop.f32.mrb[0].mxu0
    %v619 = vadd.f32 %v526, %v618
    %v620 = vpop.f32.mrb[0].mxu0
    %v621 = vpop.f32.mrb[0].mxu0
    %v622 = vadd.f32 %v526, %v621
    %v623 = vpop.f32.mrb[0].mxu0
    %624 = vdwg.mxu0
    %v625 = vpack.c.bf16 %v614, %v611
    %v626 = vpack.c.bf16 %v622, %v619
    %627 = vmatprep.subr.bf16.mxu0 0
    %628 = vmatpush1.bf16.msra.mxu0 %v625
    %629 = vmatprep.subr.bf16.mxu0 0
    %630 = vmatpush1.bf16.msra.mxu0 %v626
    %631 = vmatprep.subr.bf16.mxu0 0
    %632 = vmatpush1.bf16.msra.mxu0 0
    %633 = vmatprep.subr.bf16.mxu0 0
    %634 = vmatpush1.bf16.msra.mxu0 0
    %635 = vmatprep.subr.bf16.mxu0 0
    %636 = vmatpush1.bf16.msra.mxu0 0
    %637 = vmatprep.subr.bf16.mxu0 0
    %638 = vmatpush1.bf16.msra.mxu0 0
    %639 = vmatprep.subr.bf16.mxu0 0
    %640 = vmatpush1.bf16.msra.mxu0 0
    %641 = vmatprep.subr.bf16.mxu0 0
    %642 = vmatpush1.bf16.msra.mxu0 0
    %643 = vmatprep.subr.bf16.mxu0 0
    %644 = vmatpush1.bf16.msra.mxu0 0
    %645 = vmatprep.subr.bf16.mxu0 0
    %646 = vmatpush1.bf16.msra.mxu0 0
    %647 = vmatprep.subr.bf16.mxu0 0
    %648 = vmatpush1.bf16.msra.mxu0 0
    %649 = vmatprep.subr.bf16.mxu0 0
    %650 = vmatpush1.bf16.msra.mxu0 0
    %651 = vmatprep.subr.bf16.mxu0 0
    %652 = vmatpush1.bf16.msra.mxu0 0
    %653 = vmatprep.subr.bf16.mxu0 0
    %654 = vmatpush1.bf16.msra.mxu0 0
    %655 = vmatprep.subr.bf16.mxu0 0
    %656 = vmatpush1.bf16.msra.mxu0 0
    %657 = vmatprep.subr.bf16.mxu0 0
    %658 = vmatpush1.bf16.msra.mxu0 0
    %659 = vmatprep.mubr.bf16.mxu0 0
    %660 = vmatmul.mubr.bf16.gmra.mrb[0].mxu0 %v419
    %v661 = vpop.f32.mrb[0].mxu0
    %v662 = vadd.f32 0.0, %v661
    %v663 = vpop.f32.mrb[0].mxu0
    %v664 = vpop.f32.mrb[0].mxu0
    %v665 = vadd.f32 0.0, %v664
    %v666 = vpop.f32.mrb[0].mxu0
    %667 = vmatprep.mubr.bf16.mxu0 0
    %668 = vmatmul.mubr.bf16.gmra.mrb[0].mxu0 %v422
    %v669 = vpop.f32.mrb[0].mxu0
    %v670 = vadd.f32 0.0, %v669
    %v671 = vpop.f32.mrb[0].mxu0
    %v672 = vpop.f32.mrb[0].mxu0
    %v673 = vadd.f32 0.0, %v672
    %v674 = vpop.f32.mrb[0].mxu0
    %675 = vdwg.mxu0
    %v676 = vmul.f32 %v662, %v476
    %v677 = vmul.f32 %v665, %v481
    %v678 = vmul.f32 %v670, %v486
    %v679 = vmul.f32 %v673, %v491
    %v680 = vmax.f32 %v676, 0.0
    %v681 = vmax.f32 %v677, 0.0
    %v682 = vmax.f32 %v678, 0.0
    %v683 = vmax.f32 %v679, 0.0
    %v684 = vadd.f32 %v680, %v681
    %v685 = vrot.slane %v684, 4
    %v686 = vadd.f32 %v684, %v685
    %v687 = vrot.slane %v686, 2
    %v688 = vadd.f32 %v686, %v687
    %v689 = vrot.slane %v688, 1
    %v690 = vadd.f32 %v688, %v689
    %v691 = vadd.f32 %v682, %v683
    %v692 = vrot.slane %v691, 4
    %v693 = vadd.f32 %v691, %v692
    %v694 = vrot.slane %v693, 2
    %v695 = vadd.f32 %v693, %v694
    %v696 = vrot.slane %v695, 1
    %v697 = vadd.f32 %v695, %v696
    %v698 = vmax.f32 %v690, 0.0
    %v699 = vmax.f32 %v697, 0.0
    %v700 = vpack.c.bf16 %v698, %v698
    %v701 = vpack.c.bf16 %v699, %v699
    %v702 = vld [vmem:[#allocation10] sm:$0xf]
    %v703 = vld [vmem:[#allocation10 + $0x4] sm:$0xf]
    %v704 = vld [vmem:[#allocation10 + $0x8] sm:$0xf]
    %v705 = vld [vmem:[#allocation10 + $0xc] sm:$0xf]
    %v706 = vld [vmem:[#allocation10 + $0x10] sm:$0xf]
    %v707 = vld [vmem:[#allocation10 + $0x14] sm:$0xf]
    %v708 = vld [vmem:[#allocation10 + $0x18] sm:$0xf]
    %v709 = vld [vmem:[#allocation10 + $0x1c] sm:$0xf]
    %v710 = vld [vmem:[#allocation10 + $0x20] sm:$0xf]
    %v711 = vld [vmem:[#allocation10 + $0x24] sm:$0xf]
    %v712 = vld [vmem:[#allocation10 + $0x28] sm:$0xf]
    %v713 = vld [vmem:[#allocation10 + $0x2c] sm:$0xf]
    %v714 = vld [vmem:[#allocation10 + $0x30] sm:$0xf]
    %v715 = vld [vmem:[#allocation10 + $0x34] sm:$0xf]
    %v716 = vld [vmem:[#allocation10 + $0x38] sm:$0xf]
    %v717 = vld [vmem:[#allocation10 + $0x3c] sm:$0xf]
    %v718 = vld [vmem:[#allocation11] sm:$0x1]
    %v720 = vlaneseq
    %v721 = vshrl.u32 %v720, 7
    %v722 = vsub.s32 0, %v721
    %v723 = vrot.slane %v718, %v722
    %v727 = vunpack.c.l.b16 %v700
    %v728 = vunpack.c.l.b16 %v701
    %vm729 = vcmask 1041409
    %v730 = vsel %vm729, %v728, %v727
    %v731 = vpack.c.b16 %v730, %v730
    %v749 = vunpack.c.l.b16 %v702
    %v750 = vunpack.c.l.b16 %v703
    %v751 = vunpack.c.l.b16 %v704
    %v752 = vunpack.c.l.b16 %v705
    %v753 = vunpack.c.l.b16 %v706
    %v754 = vunpack.c.l.b16 %v707
    %v755 = vunpack.c.l.b16 %v708
    %v756 = vunpack.c.l.b16 %v709
    %v757 = vunpack.c.l.b16 %v710
    %v758 = vunpack.c.l.b16 %v711
    %v759 = vunpack.c.l.b16 %v712
    %v760 = vunpack.c.l.b16 %v713
    %v761 = vunpack.c.l.b16 %v714
    %v762 = vunpack.c.l.b16 %v715
    %v763 = vunpack.c.l.b16 %v716
    %v764 = vunpack.c.l.b16 %v717
    %v765 = vpack.c.b16 %v750, %v749
    %v766 = vpack.c.b16 %v752, %v751
    %v767 = vpack.c.b16 %v754, %v753
    %v768 = vpack.c.b16 %v756, %v755
    %v769 = vpack.c.b16 %v758, %v757
    %v770 = vpack.c.b16 %v760, %v759
    %v771 = vpack.c.b16 %v762, %v761
    %v772 = vpack.c.b16 %v764, %v763
    %781 = vmatprep.subr.bf16.mxu0 0
    %782 = vmatpush1.bf16.msra.mxu0 %v765
    %783 = vmatprep.subr.bf16.mxu0 0
    %784 = vmatpush1.bf16.msra.mxu0 %v766
    %785 = vmatprep.subr.bf16.mxu0 0
    %786 = vmatpush1.bf16.msra.mxu0 %v767
    %787 = vmatprep.subr.bf16.mxu0 0
    %788 = vmatpush1.bf16.msra.mxu0 %v768
    %789 = vmatprep.subr.bf16.mxu0 0
    %790 = vmatpush1.bf16.msra.mxu0 %v769
    %791 = vmatprep.subr.bf16.mxu0 0
    %792 = vmatpush1.bf16.msra.mxu0 %v770
    %793 = vmatprep.subr.bf16.mxu0 0
    %794 = vmatpush1.bf16.msra.mxu0 %v771
    %795 = vmatprep.subr.bf16.mxu0 0
    %796 = vmatpush1.bf16.msra.mxu0 %v772
    %797 = vmatprep.subr.bf16.mxu0 0
    %798 = vmatpush1.bf16.msra.mxu0 0
    %799 = vmatprep.subr.bf16.mxu0 0
    %800 = vmatpush1.bf16.msra.mxu0 0
    %801 = vmatprep.subr.bf16.mxu0 0
    %802 = vmatpush1.bf16.msra.mxu0 0
    %803 = vmatprep.subr.bf16.mxu0 0
    %804 = vmatpush1.bf16.msra.mxu0 0
    %805 = vmatprep.subr.bf16.mxu0 0
    %806 = vmatpush1.bf16.msra.mxu0 0
    %807 = vmatprep.subr.bf16.mxu0 0
    %808 = vmatpush1.bf16.msra.mxu0 0
    %809 = vmatprep.subr.bf16.mxu0 0
    %810 = vmatpush1.bf16.msra.mxu0 0
    %811 = vmatprep.subr.bf16.mxu0 0
    %812 = vmatpush1.bf16.msra.mxu0 0
    %813 = vmatprep.mubr.bf16.mxu0 0
    %814 = vmatmul.mubr.bf16.gmra.mrb[0].mxu0 %v731
    %v815 = vpop.f32.mrb[0].mxu0
    %v816 = vadd.f32 %v723, %v815
    %v817 = vpop.f32.mrb[0].mxu0
    %v818 = vpop.f32.mrb[0].mxu0
    %v819 = vpop.f32.mrb[0].mxu0
    %820 = vdwg.mxu0
    %v821 = vmax.f32 %v816, 0.0
    %v822 = vpack.c.bf16 %v821, %v821
    %v823 = vld [vmem:[%s9] sm:$0xf]
    %v824 = vld [vmem:[%s9 + $0x4] sm:$0xf]
    %v825 = vld [vmem:[%s9 + $0x8] sm:$0xf]
    %v826 = vld [vmem:[%s9 + $0xc] sm:$0xf]
    %v827 = vld [vmem:[%s9 + $0x10] sm:$0xf]
    %v828 = vld [vmem:[%s9 + $0x14] sm:$0xf]
    %v829 = vld [vmem:[%s9 + $0x18] sm:$0xf]
    %v830 = vld [vmem:[%s9 + $0x1c] sm:$0xf]
    %v831 = vld [vmem:[%s9 + $0x20] sm:$0xf]
    %v832 = vld [vmem:[%s9 + $0x24] sm:$0xf]
    %v833 = vld [vmem:[%s9 + $0x28] sm:$0xf]
    %v834 = vld [vmem:[%s9 + $0x2c] sm:$0xf]
    %v835 = vld [vmem:[%s9 + $0x30] sm:$0xf]
    %v836 = vld [vmem:[%s9 + $0x34] sm:$0xf]
    %v837 = vld [vmem:[%s9 + $0x38] sm:$0xf]
    %v838 = vld [vmem:[%s9 + $0x3c] sm:$0xf]
    %v839 = vld [vmem:[%s10] sm:$0x1]
    %v841 = vlaneseq
    %v842 = vshrl.u32 %v841, 7
    %v843 = vsub.s32 0, %v842
    %v844 = vrot.slane %v839, %v843
    %v862 = vunpack.c.l.b16 %v823
    %v863 = vunpack.c.l.b16 %v824
    %v864 = vunpack.c.l.b16 %v825
    %v865 = vunpack.c.l.b16 %v826
    %v866 = vunpack.c.l.b16 %v827
    %v867 = vunpack.c.l.b16 %v828
    %v868 = vunpack.c.l.b16 %v829
    %v869 = vunpack.c.l.b16 %v830
    %v870 = vunpack.c.l.b16 %v831
    %v871 = vunpack.c.l.b16 %v832
    %v872 = vunpack.c.l.b16 %v833
    %v873 = vunpack.c.l.b16 %v834
    %v874 = vunpack.c.l.b16 %v835
    %v875 = vunpack.c.l.b16 %v836
    %v876 = vunpack.c.l.b16 %v837
    %v877 = vunpack.c.l.b16 %v838
    %v878 = vpack.c.b16 %v863, %v862
    %v879 = vpack.c.b16 %v865, %v864
    %v880 = vpack.c.b16 %v867, %v866
    %v881 = vpack.c.b16 %v869, %v868
    %v882 = vpack.c.b16 %v871, %v870
    %v883 = vpack.c.b16 %v873, %v872
    %v884 = vpack.c.b16 %v875, %v874
    %v885 = vpack.c.b16 %v877, %v876
    %894 = vmatprep.subr.bf16.mxu0 0
    %895 = vmatpush1.bf16.msra.mxu0 %v878
    %896 = vmatprep.subr.bf16.mxu0 0
    %897 = vmatpush1.bf16.msra.mxu0 %v879
    %898 = vmatprep.subr.bf16.mxu0 0
    %899 = vmatpush1.bf16.msra.mxu0 %v880
    %900 = vmatprep.subr.bf16.mxu0 0
    %901 = vmatpush1.bf16.msra.mxu0 %v881
    %902 = vmatprep.subr.bf16.mxu0 0
    %903 = vmatpush1.bf16.msra.mxu0 %v882
    %904 = vmatprep.subr.bf16.mxu0 0
    %905 = vmatpush1.bf16.msra.mxu0 %v883
    %906 = vmatprep.subr.bf16.mxu0 0
    %907 = vmatpush1.bf16.msra.mxu0 %v884
    %908 = vmatprep.subr.bf16.mxu0 0
    %909 = vmatpush1.bf16.msra.mxu0 %v885
    %910 = vmatprep.subr.bf16.mxu0 0
    %911 = vmatpush1.bf16.msra.mxu0 0
    %912 = vmatprep.subr.bf16.mxu0 0
    %913 = vmatpush1.bf16.msra.mxu0 0
    %914 = vmatprep.subr.bf16.mxu0 0
    %915 = vmatpush1.bf16.msra.mxu0 0
    %916 = vmatprep.subr.bf16.mxu0 0
    %917 = vmatpush1.bf16.msra.mxu0 0
    %918 = vmatprep.subr.bf16.mxu0 0
    %919 = vmatpush1.bf16.msra.mxu0 0
    %920 = vmatprep.subr.bf16.mxu0 0
    %921 = vmatpush1.bf16.msra.mxu0 0
    %922 = vmatprep.subr.bf16.mxu0 0
    %923 = vmatpush1.bf16.msra.mxu0 0
    %924 = vmatprep.subr.bf16.mxu0 0
    %925 = vmatpush1.bf16.msra.mxu0 0
    %926 = vmatprep.mubr.bf16.mxu0 0
    %927 = vmatmul.mubr.bf16.gmra.mrb[0].mxu0 %v822
    %v928 = vpop.f32.mrb[0].mxu0
    %v929 = vadd.f32 %v844, %v928
    %v930 = vpop.f32.mrb[0].mxu0
    %v931 = vpop.f32.mrb[0].mxu0
    %v932 = vpop.f32.mrb[0].mxu0
    %933 = vdwg.mxu0
    %v934 = vmax.f32 %v929, 0.0
    %v935 = vpack.c.bf16 %v934, %v934
    %v936 = vld [vmem:[#allocation13] sm:$0xf]
    %v937 = vld [vmem:[#allocation13 + $0x4] sm:$0xf]
    %v938 = vld [vmem:[#allocation13 + $0x8] sm:$0xf]
    %v939 = vld [vmem:[#allocation13 + $0xc] sm:$0xf]
    %v940 = vld [vmem:[#allocation13 + $0x10] sm:$0xf]
    %v941 = vld [vmem:[#allocation13 + $0x14] sm:$0xf]
    %v942 = vld [vmem:[#allocation13 + $0x18] sm:$0xf]
    %v943 = vld [vmem:[#allocation13 + $0x1c] sm:$0xf]
    %v944 = vld [vmem:[#allocation13 + $0x20] sm:$0xf]
    %v945 = vld [vmem:[#allocation13 + $0x24] sm:$0xf]
    %v946 = vld [vmem:[#allocation13 + $0x28] sm:$0xf]
    %v947 = vld [vmem:[#allocation13 + $0x2c] sm:$0xf]
    %v948 = vld [vmem:[#allocation13 + $0x30] sm:$0xf]
    %v949 = vld [vmem:[#allocation13 + $0x34] sm:$0xf]
    %v950 = vld [vmem:[#allocation13 + $0x38] sm:$0xf]
    %v951 = vld [vmem:[#allocation13 + $0x3c] sm:$0xf]
    %v952 = vld [vmem:[%s12] sm:$0x1]
    %v954 = vlaneseq
    %v955 = vshrl.u32 %v954, 7
    %v956 = vsub.s32 0, %v955
    %v957 = vrot.slane %v952, %v956
    %v975 = vunpack.c.l.b16 %v936
    %v976 = vunpack.c.l.b16 %v937
    %v977 = vunpack.c.l.b16 %v938
    %v978 = vunpack.c.l.b16 %v939
    %v979 = vunpack.c.l.b16 %v940
    %v980 = vunpack.c.l.b16 %v941
    %v981 = vunpack.c.l.b16 %v942
    %v982 = vunpack.c.l.b16 %v943
    %v983 = vunpack.c.l.b16 %v944
    %v984 = vunpack.c.l.b16 %v945
    %v985 = vunpack.c.l.b16 %v946
    %v986 = vunpack.c.l.b16 %v947
    %v987 = vunpack.c.l.b16 %v948
    %v988 = vunpack.c.l.b16 %v949
    %v989 = vunpack.c.l.b16 %v950
    %v990 = vunpack.c.l.b16 %v951
    %v991 = vpack.c.b16 %v976, %v975
    %v992 = vpack.c.b16 %v978, %v977
    %v993 = vpack.c.b16 %v980, %v979
    %v994 = vpack.c.b16 %v982, %v981
    %v995 = vpack.c.b16 %v984, %v983
    %v996 = vpack.c.b16 %v986, %v985
    %v997 = vpack.c.b16 %v988, %v987
    %v998 = vpack.c.b16 %v990, %v989
    %1007 = vmatprep.subr.bf16.mxu0 0
    %1008 = vmatpush1.bf16.msra.mxu0 %v991
    %1009 = vmatprep.subr.bf16.mxu0 0
    %1010 = vmatpush1.bf16.msra.mxu0 %v992
    %1011 = vmatprep.subr.bf16.mxu0 0
    %1012 = vmatpush1.bf16.msra.mxu0 %v993
    %1013 = vmatprep.subr.bf16.mxu0 0
    %1014 = vmatpush1.bf16.msra.mxu0 %v994
    %1015 = vmatprep.subr.bf16.mxu0 0
    %1016 = vmatpush1.bf16.msra.mxu0 %v995
    %1017 = vmatprep.subr.bf16.mxu0 0
    %1018 = vmatpush1.bf16.msra.mxu0 %v996
    %1019 = vmatprep.subr.bf16.mxu0 0
    %1020 = vmatpush1.bf16.msra.mxu0 %v997
    %1021 = vmatprep.subr.bf16.mxu0 0
    %1022 = vmatpush1.bf16.msra.mxu0 %v998
    %1023 = vmatprep.subr.bf16.mxu0 0
    %1024 = vmatpush1.bf16.msra.mxu0 0
    %1025 = vmatprep.subr.bf16.mxu0 0
    %1026 = vmatpush1.bf16.msra.mxu0 0
    %1027 = vmatprep.subr.bf16.mxu0 0
    %1028 = vmatpush1.bf16.msra.mxu0 0
    %1029 = vmatprep.subr.bf16.mxu0 0
    %1030 = vmatpush1.bf16.msra.mxu0 0
    %1031 = vmatprep.subr.bf16.mxu0 0
    %1032 = vmatpush1.bf16.msra.mxu0 0
    %1033 = vmatprep.subr.bf16.mxu0 0
    %1034 = vmatpush1.bf16.msra.mxu0 0
    %1035 = vmatprep.subr.bf16.mxu0 0
    %1036 = vmatpush1.bf16.msra.mxu0 0
    %1037 = vmatprep.subr.bf16.mxu0 0
    %1038 = vmatpush1.bf16.msra.mxu0 0
    %1039 = vmatprep.mubr.bf16.mxu0 0
    %1040 = vmatmul.mubr.bf16.gmra.mrb[0].mxu0 %v935
    %v1041 = vpop.f32.mrb[0].mxu0
    %v1042 = vadd.f32 %v957, %v1041
    %v1043 = vpop.f32.mrb[0].mxu0
    %v1044 = vpop.f32.mrb[0].mxu0
    %v1045 = vpop.f32.mrb[0].mxu0
    %1046 = vdwg.mxu0
    %1047 = vst [vmem:[#allocation14] sm:$0x3] %v1042
    // Predicated region
    $region82: #{tpu_custom_call.1} parent=1 // pred_check
      _
    $region83: #{tpu_custom_call.1} parent=1 // pred_check_branch
      %1049 = sbr.rel (0) target = $region85
    $region84: #{tpu_custom_call.1} parent=1 // pred_region
      %s1051 = ssub.s32 32, 32
      %1052 = vsyncadd [#allocation4], %s1051
      %s1054 = sshll.u32 [#allocation14], 4
      %s1055 = int_to_ptr.vmem [resolvable:$true] %s1054
      %1057 = dma.vmem_to_hbm [thread:$0]  %s1055, 32, %s13, [#allocation4]
    $region85: #{tpu_custom_call.1} parent=1 // pred_fallthru
      _
    // Predicated region
    $region86: #{tpu_custom_call.1} parent=1 // pred_check
      _
    $region87: #{tpu_custom_call.1} parent=1 // pred_check_branch
      %1059 = sbr.rel (0) target = $region89
    $region88: #{tpu_custom_call.1} parent=1 // pred_region
      %1060 = dma.done [#allocation4], 32
    $region89: #{tpu_custom_call.1} parent=1 // pred_fallthru
      _
    %1061 = vsyncpa [#allocation3], 1
    %1062 = vsyncpa [#allocation6], 1
    %1063 = vsyncpa [#allocation9], 1
    %1064 = vsyncpa [#allocation12], 1
    %1065 = vsyncpa [#allocation4], 1

</llo_original>
